<compile_context>
chip_gen: v5e
topology: v5e:2x2
jax: 0.10.0
libtpu: 0.0.40
codegen_flags: <defaults>
</compile_context>

<pallas_src>
import math

import jax
import jax.numpy as jnp
from jax import lax
from jax.experimental import pallas as pl
from jax.experimental.pallas import tpu as pltpu

_LANE = 128
# a @ b.T : contract the last dim of both operands (NT matmul on the MXU).
_TRANS_B = (((1,), (1,)), ((), ()))


def _critic_kernel(
    state_ref,    # (TB, S)   state tile, native layout (batch on sublanes)
    action_ref,   # (TB, A)   action tile, native layout
    ws_ref,       # (F1, S)   state_fc weight  (PyTorch (out, in) layout)
    bs_ref,       # (F1, 1)   state_fc bias (column)
    w1a_ref,      # (F2, F1)  fc1 weight, columns acting on relu(state_fc(state))
    w1b_ref,      # (F2, A)   fc1 weight, columns acting on action
    b1_ref,       # (F2, 1)
    w2_ref,       # (F3, F2)  fc2 weight
    b2_ref,       # (F3, 1)
    w3_ref,       # (F1, F3)  fc3 weight
    b3_ref,       # (F1, 1)
    w4_ref,       # (F1, 1)   fc4 weight as a column (VPU/XLU reduce)
    b4_ref,       # (1, 1)    fc4 bias, SMEM scalar
    out_ref,      # (1, TB)   Q-values, batch on lanes (lane-dense store)
):
    f32 = jnp.float32

    # x = relu(Ws @ state^T + bs)                              -> (F1, TB)
    x = lax.dot_general(ws_ref[...], state_ref[...], _TRANS_B,
                        preferred_element_type=f32)
    x = jnp.maximum(x + bs_ref[...], 0.0)

    # fc1 on the virtual concat([x ; action]) without materializing it:
    # h = relu(W1a @ x + W1b @ action^T + b1)                  -> (F2, TB)
    h = jnp.dot(w1a_ref[...], x, preferred_element_type=f32)
    h = h + lax.dot_general(w1b_ref[...], action_ref[...], _TRANS_B,
                            preferred_element_type=f32)
    h = jnp.maximum(h + b1_ref[...], 0.0)

    # x = relu(W2 @ x + b2)                                    -> (F3, TB)
    h = jnp.dot(w2_ref[...], h, preferred_element_type=f32)
    h = jnp.maximum(h + b2_ref[...], 0.0)

    # x = relu(W3 @ x + b3)                                    -> (F1, TB)
    h = jnp.dot(w3_ref[...], h, preferred_element_type=f32)
    h = jnp.maximum(h + b3_ref[...], 0.0)

    # fc4: out-width 1 -> skip the M=1 MXU pass; VPU multiply + XLU sublane
    # reduce gives a lane-dense (1, TB) result.
    out_ref[...] = (
        jnp.sum(h * w4_ref[...], axis=0, keepdims=True) + b4_ref[0, 0]
    )


def _pick_block_b(b_pad, cap=4096):
    """Largest multiple of 128 dividing b_pad, <= cap, keeping grid >= 2 when possible."""
    assert b_pad % _LANE == 0
    if b_pad == _LANE:
        return _LANE
    # Keep at least 2 grid steps so v7x's two TensorCores both get work and
    # DMA/compute double-buffering stays alive.
    max_tb = min(cap, b_pad // 2)
    max_tb = max((max_tb // _LANE) * _LANE, _LANE)
    best = _LANE
    tb = _LANE
    while tb <= max_tb:
        if b_pad % tb == 0:
            best = tb
        tb += _LANE
    return best


def critic_forward(state, action, params, *, block_b=None):
    """Pallas-fused CriticNetwork forward (fc3_dim > 0 path). Returns (B, 1) f32."""
    B, S = state.shape
    A = action.shape[1]
    F1 = params["ws"].shape[0]
    F2 = params["w1a"].shape[0]
    F3 = params["w2"].shape[0]

    # Pad the batch to a multiple of the lane width; padded rows are sliced off
    # the output.  Keeps every tile fixed-size and lane-aligned on all chips.
    b_pad = ((B + _LANE - 1) // _LANE) * _LANE
    if b_pad != B:
        state = jnp.pad(state, ((0, b_pad - B), (0, 0)))
        action = jnp.pad(action, ((0, b_pad - B), (0, 0)))

    if block_b is None:
        block_b = _pick_block_b(b_pad)
    assert b_pad % block_b == 0 and block_b % _LANE == 0
    grid = (b_pad // block_b,)

    batch_rows = lambda i: (i, 0)    # inputs: batch tiles along the sublane axis
    batch_lanes = lambda i: (0, i)   # output: batch tiles along the lane axis
    pinned = lambda i: (0, 0)        # weights resident across all grid steps

    def w_spec(p):
        return pl.BlockSpec(p.shape, pinned)

    in_specs = [
        pl.BlockSpec((block_b, S), batch_rows),
        pl.BlockSpec((block_b, A), batch_rows),
        w_spec(params["ws"]), w_spec(params["bs"]),
        w_spec(params["w1a"]), w_spec(params["w1b"]), w_spec(params["b1"]),
        w_spec(params["w2"]), w_spec(params["b2"]),
        w_spec(params["w3"]), w_spec(params["b3"]),
        w_spec(params["w4"]),
        pl.BlockSpec(memory_space=pltpu.MemorySpace.SMEM),   # b4 scalar
    ]
    out_specs = pl.BlockSpec((1, block_b), batch_lanes)

    # Advisory cost hint for XLA scheduling around the custom call.
    flops = 2 * b_pad * (S * F1 + F1 * F2 + A * F2 + F2 * F3 + F3 * F1 + F1)
    weight_elems = (F1 * S + F1 + F2 * F1 + F2 * A + F2 + F3 * F2 + F3
                    + F1 * F3 + F1 + F1 + 1)
    bytes_accessed = 4 * (b_pad * (S + A + 1) + weight_elems)

    out_t = pl.pallas_call(
        _critic_kernel,
        out_shape=jax.ShapeDtypeStruct((1, b_pad), jnp.float32),
        grid=grid,
        in_specs=in_specs,
        out_specs=out_specs,
        compiler_params=pltpu.CompilerParams(
            dimension_semantics=("parallel",),      # batch grid -> both TCs on v7x
            vmem_limit_bytes=32 * 1024 * 1024,      # safe on v5e/v6e/v7x
        ),
        cost_estimate=pl.CostEstimate(
            flops=flops, transcendentals=0, bytes_accessed=bytes_accessed
        ),
    )(
        state, action,
        params["ws"], params["bs"],
        params["w1a"], params["w1b"], params["b1"],
        params["w2"], params["b2"],
        params["w3"], params["b3"],
        params["w4"], params["b4"],
    )
    # (1, B_pad) -> slice padding, put batch back on rows (pure layout).
    return out_t[:, :B].T


def init_params(key, state_dim, action_dim, fc1_dim, fc2_dim, fc3_dim):
    """Synthetic init mirroring CriticNetwork.reset_parameters (fc3_dim > 0).

    hidden_init uses fan_in = weight.size(0) == out_features, so weight limits
    are 1/sqrt(out_features); biases keep PyTorch's default Linear init limit
    1/sqrt(in_features).  Weights are stored in PyTorch (out, in) layout with
    fc1 pre-split into (w1a | w1b); biases are (out, 1) columns (kernel-ready).
    """
    assert fc3_dim != 0
    ks = jax.random.split(key, 10)

    def u(k, shape, lim):
        return jax.random.uniform(k, shape, jnp.float32, -lim, lim)

    w1 = u(ks[2], (fc2_dim, fc1_dim + action_dim), 1.0 / math.sqrt(fc2_dim))
    return {
        "ws": u(ks[0], (fc1_dim, state_dim), 1.0 / math.sqrt(fc1_dim)),
        "bs": u(ks[1], (fc1_dim, 1), 1.0 / math.sqrt(state_dim)),
        "w1a": w1[:, :fc1_dim],
        "w1b": w1[:, fc1_dim:],
        "b1": u(ks[3], (fc2_dim, 1), 1.0 / math.sqrt(fc1_dim + action_dim)),
        "w2": u(ks[4], (fc3_dim, fc2_dim), 1.0 / math.sqrt(fc3_dim)),
        "b2": u(ks[5], (fc3_dim, 1), 1.0 / math.sqrt(fc2_dim)),
        "w3": u(ks[6], (fc1_dim, fc3_dim), 1.0 / math.sqrt(fc1_dim)),
        "b3": u(ks[7], (fc1_dim, 1), 1.0 / math.sqrt(fc3_dim)),
        "w4": u(ks[8], (fc1_dim, 1), 0.003),          # fc4 weight as column
        "b4": u(ks[9], (1, 1), 1.0 / math.sqrt(fc1_dim)),
    }


def reference_forward(state, action, p):
    """Pure-JAX reference mirroring the PyTorch forward exactly."""
    x = jnp.maximum(state @ p["ws"].T + p["bs"].T, 0.0)
    x = jnp.concatenate([x, action], axis=1)
    w1 = jnp.concatenate([p["w1a"], p["w1b"]], axis=1)
    x = jnp.maximum(x @ w1.T + p["b1"].T, 0.0)
    x = jnp.maximum(x @ p["w2"].T + p["b2"].T, 0.0)
    x = jnp.maximum(x @ p["w3"].T + p["b3"].T, 0.0)
    return x @ p["w4"] + p["b4"]


if __name__ == "__main__":
    state_dim, action_dim = 16, 4
    fc1_dim, fc2_dim, fc3_dim = 32, 64, 32

    key = jax.random.PRNGKey(0)
    kp, ks, ka = jax.random.split(key, 3)
    params = init_params(kp, state_dim, action_dim, fc1_dim, fc2_dim, fc3_dim)

    # Case 1: B=256 -> TB=128, grid=2 (exercises megacore split + pipelining).
    B = 256
    state = jax.random.normal(ks, (B, state_dim), jnp.float32)
    action = jax.random.normal(ka, (B, action_dim), jnp.float32)
    out = critic_forward(state, action, params)
    jax.block_until_ready(out)
    ref = reference_forward(state, action, params)
    assert out.shape == (B, 1)
    assert jnp.allclose(out, ref, atol=1e-5, rtol=1e-5), "mismatch (B=256)"

    # Case 2: non-multiple-of-128 batch -> zero-padded to 256, output sliced.
    B2 = 200
    out2 = critic_forward(state[:B2], action[:B2], params)
    jax.block_until_ready(out2)
    ref2 = reference_forward(state[:B2], action[:B2], params)
    assert out2.shape == (B2, 1)
    assert jnp.allclose(out2, ref2, atol=1e-5, rtol=1e-5), "mismatch (B=200)"

    # Case 3: tiny batch -> padded to one 128-wide tile (grid of 1).
    B3 = 8
    out3 = critic_forward(state[:B3], action[:B3], params)
    jax.block_until_ready(out3)
    ref3 = reference_forward(state[:B3], action[:B3], params)
    assert out3.shape == (B3, 1)
    assert jnp.allclose(out3, ref3, atol=1e-5, rtol=1e-5), "mismatch (B=8)"

    print("KERNEL_OK")
</pallas_src>

<mosaic_0001>
module attributes {stable_mosaic.version = 11 : i64} {
  func.func @_critic_kernel(%arg0: i32, %arg1: memref<128x16xf32, #tpu.memory_space<vmem>>, %arg2: memref<128x4xf32, #tpu.memory_space<vmem>>, %arg3: memref<32x16xf32, #tpu.memory_space<vmem>>, %arg4: memref<32x1xf32, #tpu.memory_space<vmem>>, %arg5: memref<64x32xf32, #tpu.memory_space<vmem>>, %arg6: memref<64x4xf32, #tpu.memory_space<vmem>>, %arg7: memref<64x1xf32, #tpu.memory_space<vmem>>, %arg8: memref<32x64xf32, #tpu.memory_space<vmem>>, %arg9: memref<32x1xf32, #tpu.memory_space<vmem>>, %arg10: memref<32x32xf32, #tpu.memory_space<vmem>>, %arg11: memref<32x1xf32, #tpu.memory_space<vmem>>, %arg12: memref<32x1xf32, #tpu.memory_space<vmem>>, %arg13: memref<1x1xf32, #tpu.memory_space<smem>>, %arg14: memref<1x128xf32, #tpu.memory_space<vmem>>) attributes {dimension_semantics = [#tpu.dimension_semantics<parallel>], iteration_bounds = array<i64: 2>, scalar_prefetch = 0 : i64, scratch_operands = 0 : i64, tpu.core_type = #tpu.core_type<tc>, window_params = [{transform_indices = @transform_0, window_bounds = array<i64: 128, 16>}, {transform_indices = @transform_1, window_bounds = array<i64: 128, 4>}, {pipeline_mode = #tpu.pipeline_mode<synchronous>, transform_indices = @transform_2, window_bounds = array<i64: 32, 16>}, {pipeline_mode = #tpu.pipeline_mode<synchronous>, transform_indices = @transform_3, window_bounds = array<i64: 32, 1>}, {pipeline_mode = #tpu.pipeline_mode<synchronous>, transform_indices = @transform_4, window_bounds = array<i64: 64, 32>}, {pipeline_mode = #tpu.pipeline_mode<synchronous>, transform_indices = @transform_5, window_bounds = array<i64: 64, 4>}, {pipeline_mode = #tpu.pipeline_mode<synchronous>, transform_indices = @transform_6, window_bounds = array<i64: 64, 1>}, {pipeline_mode = #tpu.pipeline_mode<synchronous>, transform_indices = @transform_7, window_bounds = array<i64: 32, 64>}, {pipeline_mode = #tpu.pipeline_mode<synchronous>, transform_indices = @transform_8, window_bounds = array<i64: 32, 1>}, {pipeline_mode = #tpu.pipeline_mode<synchronous>, transform_indices = @transform_9, window_bounds = array<i64: 32, 32>}, {pipeline_mode = #tpu.pipeline_mode<synchronous>, transform_indices = @transform_10, window_bounds = array<i64: 32, 1>}, {pipeline_mode = #tpu.pipeline_mode<synchronous>, transform_indices = @transform_11, window_bounds = array<i64: 32, 1>}, {transform_indices = @transform_12, window_bounds = array<i64: 1, 1>}, {transform_indices = @transform_13, window_bounds = array<i64: 1, 128>}]} {
    %c0 = arith.constant 0 : index
    %c0_0 = arith.constant 0 : index
    %0 = vector.load %arg3[%c0, %c0_0] : memref<32x16xf32, #tpu.memory_space<vmem>>, vector<32x16xf32>
    %c0_1 = arith.constant 0 : index
    %c0_2 = arith.constant 0 : index
    %1 = vector.load %arg1[%c0_1, %c0_2] : memref<128x16xf32, #tpu.memory_space<vmem>>, vector<128x16xf32>
    %cst = arith.constant dense<0.000000e+00> : vector<32x128xf32>
    %2 = tpu.matmul %0, %1, %cst {dimension_numbers = #tpu.dot_dimension_numbers<[1], [1], [0], [0], [0, 0, 1, 0], [], []>} : vector<32x16xf32>, vector<128x16xf32>, vector<32x128xf32> -> vector<32x128xf32>
    %c0_3 = arith.constant 0 : index
    %c0_4 = arith.constant 0 : index
    %3 = vector.load %arg4[%c0_3, %c0_4] : memref<32x1xf32, #tpu.memory_space<vmem>>, vector<32x1xf32>
    %4 = vector.broadcast %3 : vector<32x1xf32> to vector<32x128xf32>
    %5 = arith.addf %2, %4 : vector<32x128xf32>
    %cst_5 = arith.constant 0.000000e+00 : f32
    %6 = vector.broadcast %cst_5 : f32 to vector<32x128xf32>
    %7 = arith.maximumf %5, %6 : vector<32x128xf32>
    %c0_6 = arith.constant 0 : index
    %c0_7 = arith.constant 0 : index
    %8 = vector.load %arg5[%c0_6, %c0_7] : memref<64x32xf32, #tpu.memory_space<vmem>>, vector<64x32xf32>
    %cst_8 = arith.constant dense<0.000000e+00> : vector<64x128xf32>
    %9 = tpu.matmul %8, %7, %cst_8 {dimension_numbers = #tpu.dot_dimension_numbers<[1], [0], [0], [1], [0, 0, 1, 1], [], []>} : vector<64x32xf32>, vector<32x128xf32>, vector<64x128xf32> -> vector<64x128xf32>
    %c0_9 = arith.constant 0 : index
    %c0_10 = arith.constant 0 : index
    %10 = vector.load %arg6[%c0_9, %c0_10] : memref<64x4xf32, #tpu.memory_space<vmem>>, vector<64x4xf32>
    %c0_11 = arith.constant 0 : index
    %c0_12 = arith.constant 0 : index
    %11 = vector.load %arg2[%c0_11, %c0_12] : memref<128x4xf32, #tpu.memory_space<vmem>>, vector<128x4xf32>
    %cst_13 = arith.constant dense<0.000000e+00> : vector<64x128xf32>
    %12 = tpu.matmul %10, %11, %cst_13 {dimension_numbers = #tpu.dot_dimension_numbers<[1], [1], [0], [0], [0, 0, 1, 0], [], []>} : vector<64x4xf32>, vector<128x4xf32>, vector<64x128xf32> -> vector<64x128xf32>
    %13 = arith.addf %9, %12 : vector<64x128xf32>
    %c0_14 = arith.constant 0 : index
    %c0_15 = arith.constant 0 : index
    %14 = vector.load %arg7[%c0_14, %c0_15] : memref<64x1xf32, #tpu.memory_space<vmem>>, vector<64x1xf32>
    %15 = vector.broadcast %14 : vector<64x1xf32> to vector<64x128xf32>
    %16 = arith.addf %13, %15 : vector<64x128xf32>
    %cst_16 = arith.constant 0.000000e+00 : f32
    %17 = vector.broadcast %cst_16 : f32 to vector<64x128xf32>
    %18 = arith.maximumf %16, %17 : vector<64x128xf32>
    %c0_17 = arith.constant 0 : index
    %c0_18 = arith.constant 0 : index
    %19 = vector.load %arg8[%c0_17, %c0_18] : memref<32x64xf32, #tpu.memory_space<vmem>>, vector<32x64xf32>
    %cst_19 = arith.constant dense<0.000000e+00> : vector<32x128xf32>
    %20 = tpu.matmul %19, %18, %cst_19 {dimension_numbers = #tpu.dot_dimension_numbers<[1], [0], [0], [1], [0, 0, 1, 1], [], []>} : vector<32x64xf32>, vector<64x128xf32>, vector<32x128xf32> -> vector<32x128xf32>
    %c0_20 = arith.constant 0 : index
    %c0_21 = arith.constant 0 : index
    %21 = vector.load %arg9[%c0_20, %c0_21] : memref<32x1xf32, #tpu.memory_space<vmem>>, vector<32x1xf32>
    %22 = vector.broadcast %21 : vector<32x1xf32> to vector<32x128xf32>
    %23 = arith.addf %20, %22 : vector<32x128xf32>
    %cst_22 = arith.constant 0.000000e+00 : f32
    %24 = vector.broadcast %cst_22 : f32 to vector<32x128xf32>
    %25 = arith.maximumf %23, %24 : vector<32x128xf32>
    %c0_23 = arith.constant 0 : index
    %c0_24 = arith.constant 0 : index
    %26 = vector.load %arg10[%c0_23, %c0_24] : memref<32x32xf32, #tpu.memory_space<vmem>>, vector<32x32xf32>
    %cst_25 = arith.constant dense<0.000000e+00> : vector<32x128xf32>
    %27 = tpu.matmul %26, %25, %cst_25 {dimension_numbers = #tpu.dot_dimension_numbers<[1], [0], [0], [1], [0, 0, 1, 1], [], []>} : vector<32x32xf32>, vector<32x128xf32>, vector<32x128xf32> -> vector<32x128xf32>
    %c0_26 = arith.constant 0 : index
    %c0_27 = arith.constant 0 : index
    %28 = vector.load %arg11[%c0_26, %c0_27] : memref<32x1xf32, #tpu.memory_space<vmem>>, vector<32x1xf32>
    %29 = vector.broadcast %28 : vector<32x1xf32> to vector<32x128xf32>
    %30 = arith.addf %27, %29 : vector<32x128xf32>
    %cst_28 = arith.constant 0.000000e+00 : f32
    %31 = vector.broadcast %cst_28 : f32 to vector<32x128xf32>
    %32 = arith.maximumf %30, %31 : vector<32x128xf32>
    %c0_29 = arith.constant 0 : index
    %c0_30 = arith.constant 0 : index
    %33 = vector.load %arg12[%c0_29, %c0_30] : memref<32x1xf32, #tpu.memory_space<vmem>>, vector<32x1xf32>
    %34 = vector.broadcast %33 : vector<32x1xf32> to vector<32x128xf32>
    %35 = arith.mulf %32, %34 : vector<32x128xf32>
    %cst_31 = arith.constant dense<0.000000e+00> : vector<128xf32>
    %36 = vector.multi_reduction <add>, %35, %cst_31 [0] : vector<32x128xf32> to vector<128xf32>
    %37 = vector.shape_cast %36 : vector<128xf32> to vector<1x128xf32>
    %c0_32 = arith.constant 0 : index
    %c0_33 = arith.constant 0 : index
    %38 = memref.load %arg13[%c0_32, %c0_33] : memref<1x1xf32, #tpu.memory_space<smem>>
    %39 = vector.broadcast %38 : f32 to vector<1x128xf32>
    %40 = arith.addf %37, %39 : vector<1x128xf32>
    %c0_34 = arith.constant 0 : index
    %c0_35 = arith.constant 0 : index
    %41 = vector.load %arg14[%c0_34, %c0_35] : memref<1x128xf32, #tpu.memory_space<vmem>>, vector<1x128xf32>
    tpu.vector_store %arg14[%c0_34, %c0_35], %40 {strides = array<i32>} : memref<1x128xf32, #tpu.memory_space<vmem>>, vector<1x128xf32>,
    return
  }
  func.func @transform_0(%arg0: i32) -> (i32, i32) {
    %c0_i32 = arith.constant 0 : i32
    %c0_i32_0 = arith.constant 0 : i32
    return %arg0, %c0_i32 : i32, i32
  }
  func.func @transform_1(%arg0: i32) -> (i32, i32) {
    %c0_i32 = arith.constant 0 : i32
    %c0_i32_0 = arith.constant 0 : i32
    return %arg0, %c0_i32 : i32, i32
  }
  func.func @transform_2(%arg0: i32) -> (i32, i32) {
    %c0_i32 = arith.constant 0 : i32
    %c0_i32_0 = arith.constant 0 : i32
    %c0_i32_1 = arith.constant 0 : i32
    return %c0_i32, %c0_i32_0 : i32, i32
  }
  func.func @transform_3(%arg0: i32) -> (i32, i32) {
    %c0_i32 = arith.constant 0 : i32
    %c0_i32_0 = arith.constant 0 : i32
    %c0_i32_1 = arith.constant 0 : i32
    return %c0_i32, %c0_i32_0 : i32, i32
  }
  func.func @transform_4(%arg0: i32) -> (i32, i32) {
    %c0_i32 = arith.constant 0 : i32
    %c0_i32_0 = arith.constant 0 : i32
    %c0_i32_1 = arith.constant 0 : i32
    return %c0_i32, %c0_i32_0 : i32, i32
  }
  func.func @transform_5(%arg0: i32) -> (i32, i32) {
    %c0_i32 = arith.constant 0 : i32
    %c0_i32_0 = arith.constant 0 : i32
    %c0_i32_1 = arith.constant 0 : i32
    return %c0_i32, %c0_i32_0 : i32, i32
  }
  func.func @transform_6(%arg0: i32) -> (i32, i32) {
    %c0_i32 = arith.constant 0 : i32
    %c0_i32_0 = arith.constant 0 : i32
    %c0_i32_1 = arith.constant 0 : i32
    return %c0_i32, %c0_i32_0 : i32, i32
  }
  func.func @transform_7(%arg0: i32) -> (i32, i32) {
    %c0_i32 = arith.constant 0 : i32
    %c0_i32_0 = arith.constant 0 : i32
    %c0_i32_1 = arith.constant 0 : i32
    return %c0_i32, %c0_i32_0 : i32, i32
  }
  func.func @transform_8(%arg0: i32) -> (i32, i32) {
    %c0_i32 = arith.constant 0 : i32
    %c0_i32_0 = arith.constant 0 : i32
    %c0_i32_1 = arith.constant 0 : i32
    return %c0_i32, %c0_i32_0 : i32, i32
  }
  func.func @transform_9(%arg0: i32) -> (i32, i32) {
    %c0_i32 = arith.constant 0 : i32
    %c0_i32_0 = arith.constant 0 : i32
    %c0_i32_1 = arith.constant 0 : i32
    return %c0_i32, %c0_i32_0 : i32, i32
  }
  func.func @transform_10(%arg0: i32) -> (i32, i32) {
    %c0_i32 = arith.constant 0 : i32
    %c0_i32_0 = arith.constant 0 : i32
    %c0_i32_1 = arith.constant 0 : i32
    return %c0_i32, %c0_i32_0 : i32, i32
  }
  func.func @transform_11(%arg0: i32) -> (i32, i32) {
    %c0_i32 = arith.constant 0 : i32
    %c0_i32_0 = arith.constant 0 : i32
    %c0_i32_1 = arith.constant 0 : i32
    return %c0_i32, %c0_i32_0 : i32, i32
  }
  func.func @transform_12(%arg0: i32) -> (i32, i32) {
    %c0_i32 = arith.constant 0 : i32
    %c0_i32_0 = arith.constant 0 : i32
    %c0_i32_1 = arith.constant 0 : i32
    return %c0_i32, %c0_i32_0 : i32, i32
  }
  func.func @transform_13(%arg0: i32) -> (i32, i32) {
    %c0_i32 = arith.constant 0 : i32
    %c0_i32_0 = arith.constant 0 : i32
    return %c0_i32, %arg0 : i32, i32
  }
}

</mosaic_0001>

<llo_original>
// kernel: tpu_custom_call.1
$region0: #{tpu_custom_call.1}
  #allocation0 [shape = 'u32[]', space=smem, size = 0x4, offset = 0x4, fixed_abs, tag = 'smem constant byte address 0x4 - core index']
  #allocation1 [shape = 'u32[72,128]{1,0:T(1,128)}', space=vmem, size = 0x9000, scoped, tag = 'internal scratch']
  #allocation2 [shape = 'f32[1,1]{1,0:T(1,128)S(6)}', space=smem, size = 0x200, scoped, tag = 'scoped memory for tpu_custom_call.1']
  %s0 = inlined_call_operand.vmem [shape: f32[256,16], index: 0, kind: input, shape index: {}]
  %s1 = inlined_call_operand.vmem [shape: f32[256,4], index: 1, kind: input, shape index: {}]
  %s2 = inlined_call_operand.vmem [shape: f32[32,16], index: 2, kind: input, shape index: {}]
  %s3 = inlined_call_operand.vmem [shape: f32[32,1], index: 3, kind: input, shape index: {}]
  %s4 = inlined_call_operand.vmem [shape: f32[64,32], index: 4, kind: input, shape index: {}]
  %s5 = inlined_call_operand.vmem [shape: f32[64,4], index: 5, kind: input, shape index: {}]
  %s6 = inlined_call_operand.vmem [shape: f32[64,1], index: 6, kind: input, shape index: {}]
  %s7 = inlined_call_operand.vmem [shape: f32[32,64], index: 7, kind: input, shape index: {}]
  %s8 = inlined_call_operand.vmem [shape: f32[32,1], index: 8, kind: input, shape index: {}]
  %s9 = inlined_call_operand.vmem [shape: f32[32,32], index: 9, kind: input, shape index: {}]
  %s10 = inlined_call_operand.vmem [shape: f32[32,1], index: 10, kind: input, shape index: {}]
  %s11 = inlined_call_operand.vmem [shape: f32[32,1], index: 11, kind: input, shape index: {}]
  %s12 = inlined_call_operand.<no memory space> [shape: f32[1,1], index: 12, kind: input, shape index: {}]
  %s13 = inlined_call_operand.hbm [shape: f32[1,256], index: 13, kind: output, shape index: {}]
  %s14 = sld [smem:[#allocation0]]
  $region85: #{tpu_custom_call.1} parent=0
    _
  %s16 = ssub.s32 1, %s14
  %s17 = scalar_select 0, %s16, %s14
  %18 = sst [smem:[#allocation2]] %s12
  $region1: #{tpu_custom_call.1} parent=0
    #allocation3 [shape = 'u8[1024]{0}', space=vmem, size = 0x400, scoped, tag = 'output window, operand 0']
    #allocation4 [shape = 's32[2]{0}', space=sflag, size = 0x8, scoped, tag = 'scoped memory for tpu_custom_call.1']
    %19 = vsyncpa [#allocation4], 0
    %s20 = scalar_lea.sflag [#allocation4], 1
    %21 = vsyncpa %s20, 0
    loop: start=0, step=1, limit=4
    $region2: #{tpu_custom_call.1} parent=1 // loop_pre_header
      _
    $region3: #{tpu_custom_call.1} parent=1 // loop_header
      %s23 = sphi 0, %s27
      %p24 = scmp.ge.s32.totalorder %s23, 4
      %s33 = sphi 0, %s35
      %s36 = sphi 0, %s33
      %s37 = sphi 0, %s36
      %s53 = sphi 0, %s37
      %s59 = sphi 0, %s61
      %s62 = sphi 0, %s59
      %s63 = sphi 0, %s62
      %s79 = sphi 0, %s63
      %s83 = sphi 0, %s83
      %s85 = sphi 0, %s83
      %s86 = sphi 0, %s85
      %s100 = sphi 0, %s86
      %s104 = sphi 0, %s104
      %s106 = sphi 0, %s104
      %s107 = sphi 0, %s106
      %s121 = sphi 0, %s107
      %s125 = sphi 0, %s125
      %s127 = sphi 0, %s125
      %s128 = sphi 0, %s127
      %s142 = sphi 0, %s128
      %s146 = sphi 0, %s146
      %s148 = sphi 0, %s146
      %s149 = sphi 0, %s148
      %s163 = sphi 0, %s149
      %s167 = sphi 0, %s167
      %s169 = sphi 0, %s167
      %s170 = sphi 0, %s169
      %s184 = sphi 0, %s170
      %s188 = sphi 0, %s188
      %s190 = sphi 0, %s188
      %s191 = sphi 0, %s190
      %s205 = sphi 0, %s191
      %s209 = sphi 0, %s209
      %s211 = sphi 0, %s209
      %s212 = sphi 0, %s211
      %s226 = sphi 0, %s212
      %s230 = sphi 0, %s230
      %s232 = sphi 0, %s230
      %s233 = sphi 0, %s232
      %s247 = sphi 0, %s233
      %s251 = sphi 0, %s251
      %s253 = sphi 0, %s251
      %s254 = sphi 0, %s253
      %s268 = sphi 0, %s254
      %s272 = sphi 0, %s272
      %s274 = sphi 0, %s272
      %s275 = sphi 0, %s274
      %s289 = sphi 0, %s275
      %s293 = sphi 0, %s293
      %s295 = sphi 0, %s293
      %s296 = sphi 0, %s295
      %s310 = sphi 0, %s296
      %s316 = sphi 0, %s318
      %s319 = sphi 0, %s316
      %s320 = sphi 0, %s319
      %s336 = sphi 0, %s320
    $region4: #{tpu_custom_call.1} parent=1 // loop_header_branch
      %26 = sbr.rel (%p24) target = $region8
    $region5: #{tpu_custom_call.1} parent=1 // loop_body
      %s28 = ssub.s32 %s23, 1
      %s29 = ssub.s32 %s23, 2
      %s30 = sadd.s32 %s23, 1
      %s31 = ssub.s32 %s23, %s30
      %p32 = scmp.eq.s32.totalorder %s31, 0
      %s34 = sadd.s32 %s33, 1
      %s35 = scalar_select %p32, %s33, %s34
      %p38 = pneg %p32
      %p39 = scmp.eq.s32.totalorder %s23, 1
      %p40 = por %p38, %p39
      %p41 = scmp.ne.s32.totalorder %s33, %s36
      %p42 = scmp.eq.s32.totalorder %s23, 0
      %p43 = por %p41, %p42
      %p44 = scmp.ne.s32.totalorder %s33, %s36
      %p45 = scmp.eq.s32.totalorder %s28, 1
      %p46 = por %p44, %p45
      %p47 = scmp.ne.s32.totalorder %s36, %s37
      %p48 = scmp.eq.s32.totalorder %s28, 0
      %p49 = por %p47, %p48
      %p50 = scmp.ne.s32.totalorder %s36, %s37
      %p51 = scmp.eq.s32.totalorder %s29, 1
      %p52 = por %p50, %p51
      %p54 = scmp.ne.s32.totalorder %s37, %s53
      %p55 = scmp.eq.s32.totalorder %s29, 0
      %p56 = por %p54, %p55
      %s57 = ssub.s32 %s23, %s30
      %p58 = scmp.eq.s32.totalorder %s57, 0
      %s60 = sadd.s32 %s59, 1
      %s61 = scalar_select %p58, %s59, %s60
      %p64 = pneg %p58
      %p65 = scmp.eq.s32.totalorder %s23, 1
      %p66 = por %p64, %p65
      %p67 = scmp.ne.s32.totalorder %s59, %s62
      %p68 = scmp.eq.s32.totalorder %s23, 0
      %p69 = por %p67, %p68
      %p70 = scmp.ne.s32.totalorder %s59, %s62
      %p71 = scmp.eq.s32.totalorder %s28, 1
      %p72 = por %p70, %p71
      %p73 = scmp.ne.s32.totalorder %s62, %s63
      %p74 = scmp.eq.s32.totalorder %s28, 0
      %p75 = por %p73, %p74
      %p76 = scmp.ne.s32.totalorder %s62, %s63
      %p77 = scmp.eq.s32.totalorder %s29, 1
      %p78 = por %p76, %p77
      %p80 = scmp.ne.s32.totalorder %s63, %s79
      %p81 = scmp.eq.s32.totalorder %s29, 0
      %p82 = por %p80, %p81
      %s84 = sadd.s32 %s83, 1
      %p87 = scmp.eq.s32.totalorder %s23, 1
      %p88 = scmp.ne.s32.totalorder %s83, %s85
      %p89 = scmp.eq.s32.totalorder %s23, 0
      %p90 = por %p88, %p89
      %p91 = scmp.ne.s32.totalorder %s83, %s85
      %p92 = scmp.eq.s32.totalorder %s28, 1
      %p93 = por %p91, %p92
      %p94 = scmp.ne.s32.totalorder %s85, %s86
      %p95 = scmp.eq.s32.totalorder %s28, 0
      %p96 = por %p94, %p95
      %p97 = scmp.ne.s32.totalorder %s85, %s86
      %p98 = scmp.eq.s32.totalorder %s29, 1
      %p99 = por %p97, %p98
      %p101 = scmp.ne.s32.totalorder %s86, %s100
      %p102 = scmp.eq.s32.totalorder %s29, 0
      %p103 = por %p101, %p102
      %s105 = sadd.s32 %s104, 1
      %p108 = scmp.eq.s32.totalorder %s23, 1
      %p109 = scmp.ne.s32.totalorder %s104, %s106
      %p110 = scmp.eq.s32.totalorder %s23, 0
      %p111 = por %p109, %p110
      %p112 = scmp.ne.s32.totalorder %s104, %s106
      %p113 = scmp.eq.s32.totalorder %s28, 1
      %p114 = por %p112, %p113
      %p115 = scmp.ne.s32.totalorder %s106, %s107
      %p116 = scmp.eq.s32.totalorder %s28, 0
      %p117 = por %p115, %p116
      %p118 = scmp.ne.s32.totalorder %s106, %s107
      %p119 = scmp.eq.s32.totalorder %s29, 1
      %p120 = por %p118, %p119
      %p122 = scmp.ne.s32.totalorder %s107, %s121
      %p123 = scmp.eq.s32.totalorder %s29, 0
      %p124 = por %p122, %p123
      %s126 = sadd.s32 %s125, 1
      %p129 = scmp.eq.s32.totalorder %s23, 1
      %p130 = scmp.ne.s32.totalorder %s125, %s127
      %p131 = scmp.eq.s32.totalorder %s23, 0
      %p132 = por %p130, %p131
      %p133 = scmp.ne.s32.totalorder %s125, %s127
      %p134 = scmp.eq.s32.totalorder %s28, 1
      %p135 = por %p133, %p134
      %p136 = scmp.ne.s32.totalorder %s127, %s128
      %p137 = scmp.eq.s32.totalorder %s28, 0
      %p138 = por %p136, %p137
      %p139 = scmp.ne.s32.totalorder %s127, %s128
      %p140 = scmp.eq.s32.totalorder %s29, 1
      %p141 = por %p139, %p140
      %p143 = scmp.ne.s32.totalorder %s128, %s142
      %p144 = scmp.eq.s32.totalorder %s29, 0
      %p145 = por %p143, %p144
      %s147 = sadd.s32 %s146, 1
      %p150 = scmp.eq.s32.totalorder %s23, 1
      %p151 = scmp.ne.s32.totalorder %s146, %s148
      %p152 = scmp.eq.s32.totalorder %s23, 0
      %p153 = por %p151, %p152
      %p154 = scmp.ne.s32.totalorder %s146, %s148
      %p155 = scmp.eq.s32.totalorder %s28, 1
      %p156 = por %p154, %p155
      %p157 = scmp.ne.s32.totalorder %s148, %s149
      %p158 = scmp.eq.s32.totalorder %s28, 0
      %p159 = por %p157, %p158
      %p160 = scmp.ne.s32.totalorder %s148, %s149
      %p161 = scmp.eq.s32.totalorder %s29, 1
      %p162 = por %p160, %p161
      %p164 = scmp.ne.s32.totalorder %s149, %s163
      %p165 = scmp.eq.s32.totalorder %s29, 0
      %p166 = por %p164, %p165
      %s168 = sadd.s32 %s167, 1
      %p171 = scmp.eq.s32.totalorder %s23, 1
      %p172 = scmp.ne.s32.totalorder %s167, %s169
      %p173 = scmp.eq.s32.totalorder %s23, 0
      %p174 = por %p172, %p173
      %p175 = scmp.ne.s32.totalorder %s167, %s169
      %p176 = scmp.eq.s32.totalorder %s28, 1
      %p177 = por %p175, %p176
      %p178 = scmp.ne.s32.totalorder %s169, %s170
      %p179 = scmp.eq.s32.totalorder %s28, 0
      %p180 = por %p178, %p179
      %p181 = scmp.ne.s32.totalorder %s169, %s170
      %p182 = scmp.eq.s32.totalorder %s29, 1
      %p183 = por %p181, %p182
      %p185 = scmp.ne.s32.totalorder %s170, %s184
      %p186 = scmp.eq.s32.totalorder %s29, 0
      %p187 = por %p185, %p186
      %s189 = sadd.s32 %s188, 1
      %p192 = scmp.eq.s32.totalorder %s23, 1
      %p193 = scmp.ne.s32.totalorder %s188, %s190
      %p194 = scmp.eq.s32.totalorder %s23, 0
      %p195 = por %p193, %p194
      %p196 = scmp.ne.s32.totalorder %s188, %s190
      %p197 = scmp.eq.s32.totalorder %s28, 1
      %p198 = por %p196, %p197
      %p199 = scmp.ne.s32.totalorder %s190, %s191
      %p200 = scmp.eq.s32.totalorder %s28, 0
      %p201 = por %p199, %p200
      %p202 = scmp.ne.s32.totalorder %s190, %s191
      %p203 = scmp.eq.s32.totalorder %s29, 1
      %p204 = por %p202, %p203
      %p206 = scmp.ne.s32.totalorder %s191, %s205
      %p207 = scmp.eq.s32.totalorder %s29, 0
      %p208 = por %p206, %p207
      %s210 = sadd.s32 %s209, 1
      %p213 = scmp.eq.s32.totalorder %s23, 1
      %p214 = scmp.ne.s32.totalorder %s209, %s211
      %p215 = scmp.eq.s32.totalorder %s23, 0
      %p216 = por %p214, %p215
      %p217 = scmp.ne.s32.totalorder %s209, %s211
      %p218 = scmp.eq.s32.totalorder %s28, 1
      %p219 = por %p217, %p218
      %p220 = scmp.ne.s32.totalorder %s211, %s212
      %p221 = scmp.eq.s32.totalorder %s28, 0
      %p222 = por %p220, %p221
      %p223 = scmp.ne.s32.totalorder %s211, %s212
      %p224 = scmp.eq.s32.totalorder %s29, 1
      %p225 = por %p223, %p224
      %p227 = scmp.ne.s32.totalorder %s212, %s226
      %p228 = scmp.eq.s32.totalorder %s29, 0
      %p229 = por %p227, %p228
      %s231 = sadd.s32 %s230, 1
      %p234 = scmp.eq.s32.totalorder %s23, 1
      %p235 = scmp.ne.s32.totalorder %s230, %s232
      %p236 = scmp.eq.s32.totalorder %s23, 0
      %p237 = por %p235, %p236
      %p238 = scmp.ne.s32.totalorder %s230, %s232
      %p239 = scmp.eq.s32.totalorder %s28, 1
      %p240 = por %p238, %p239
      %p241 = scmp.ne.s32.totalorder %s232, %s233
      %p242 = scmp.eq.s32.totalorder %s28, 0
      %p243 = por %p241, %p242
      %p244 = scmp.ne.s32.totalorder %s232, %s233
      %p245 = scmp.eq.s32.totalorder %s29, 1
      %p246 = por %p244, %p245
      %p248 = scmp.ne.s32.totalorder %s233, %s247
      %p249 = scmp.eq.s32.totalorder %s29, 0
      %p250 = por %p248, %p249
      %s252 = sadd.s32 %s251, 1
      %p255 = scmp.eq.s32.totalorder %s23, 1
      %p256 = scmp.ne.s32.totalorder %s251, %s253
      %p257 = scmp.eq.s32.totalorder %s23, 0
      %p258 = por %p256, %p257
      %p259 = scmp.ne.s32.totalorder %s251, %s253
      %p260 = scmp.eq.s32.totalorder %s28, 1
      %p261 = por %p259, %p260
      %p262 = scmp.ne.s32.totalorder %s253, %s254
      %p263 = scmp.eq.s32.totalorder %s28, 0
      %p264 = por %p262, %p263
      %p265 = scmp.ne.s32.totalorder %s253, %s254
      %p266 = scmp.eq.s32.totalorder %s29, 1
      %p267 = por %p265, %p266
      %p269 = scmp.ne.s32.totalorder %s254, %s268
      %p270 = scmp.eq.s32.totalorder %s29, 0
      %p271 = por %p269, %p270
      %s273 = sadd.s32 %s272, 1
      %p276 = scmp.eq.s32.totalorder %s23, 1
      %p277 = scmp.ne.s32.totalorder %s272, %s274
      %p278 = scmp.eq.s32.totalorder %s23, 0
      %p279 = por %p277, %p278
      %p280 = scmp.ne.s32.totalorder %s272, %s274
      %p281 = scmp.eq.s32.totalorder %s28, 1
      %p282 = por %p280, %p281
      %p283 = scmp.ne.s32.totalorder %s274, %s275
      %p284 = scmp.eq.s32.totalorder %s28, 0
      %p285 = por %p283, %p284
      %p286 = scmp.ne.s32.totalorder %s274, %s275
      %p287 = scmp.eq.s32.totalorder %s29, 1
      %p288 = por %p286, %p287
      %p290 = scmp.ne.s32.totalorder %s275, %s289
      %p291 = scmp.eq.s32.totalorder %s29, 0
      %p292 = por %p290, %p291
      %s294 = sadd.s32 %s293, 1
      %p297 = scmp.eq.s32.totalorder %s23, 1
      %p298 = scmp.ne.s32.totalorder %s293, %s295
      %p299 = scmp.eq.s32.totalorder %s23, 0
      %p300 = por %p298, %p299
      %p301 = scmp.ne.s32.totalorder %s293, %s295
      %p302 = scmp.eq.s32.totalorder %s28, 1
      %p303 = por %p301, %p302
      %p304 = scmp.ne.s32.totalorder %s295, %s296
      %p305 = scmp.eq.s32.totalorder %s28, 0
      %p306 = por %p304, %p305
      %p307 = scmp.ne.s32.totalorder %s295, %s296
      %p308 = scmp.eq.s32.totalorder %s29, 1
      %p309 = por %p307, %p308
      %p311 = scmp.ne.s32.totalorder %s296, %s310
      %p312 = scmp.eq.s32.totalorder %s29, 0
      %p313 = por %p311, %p312
      %s314 = ssub.s32 %s23, %s30
      %p315 = scmp.eq.s32.totalorder %s314, 0
      %s317 = sadd.s32 %s316, 1
      %s318 = scalar_select %p315, %s316, %s317
      %p321 = pneg %p315
      %p322 = scmp.eq.s32.totalorder %s23, 1
      %p323 = por %p321, %p322
      %p324 = scmp.ne.s32.totalorder %s316, %s319
      %p325 = scmp.eq.s32.totalorder %s23, 0
      %p326 = por %p324, %p325
      %p327 = scmp.ne.s32.totalorder %s316, %s319
      %p328 = scmp.eq.s32.totalorder %s28, 1
      %p329 = por %p327, %p328
      %p330 = scmp.ne.s32.totalorder %s319, %s320
      %p331 = scmp.eq.s32.totalorder %s28, 0
      %p332 = por %p330, %p331
      %p333 = scmp.ne.s32.totalorder %s319, %s320
      %p334 = scmp.eq.s32.totalorder %s29, 1
      %p335 = por %p333, %p334
      %p337 = scmp.ne.s32.totalorder %s320, %s336
      %p338 = scmp.eq.s32.totalorder %s29, 0
      %p339 = por %p337, %p338
      %p340 = scmp.le.s32.totalorder 1, %s23
      %p341 = scmp.lt.s32.totalorder %s23, 3
      %p342 = pnand %p340, %p341
      %p343 = pneg %p342
      // Predicated region
      $region9: #{tpu_custom_call.1} parent=5 // pred_check
        _
      $region10: #{tpu_custom_call.1} parent=5 // pred_check_branch
        %345 = sbr.rel (%p342) target = $region12
      $region11: #{tpu_custom_call.1} parent=5 // pred_region
        %s346 = ssub.s32 %s23, 1
        // Predicated region
        $region13: #{tpu_custom_call.1} parent=11 // pred_check
          %p347 = pneg %p96
        $region14: #{tpu_custom_call.1} parent=11 // pred_check_branch
          %349 = sbr.rel (%p347) target = $region16
        $region15: #{tpu_custom_call.1} parent=11 // pred_region
          _
        $region16: #{tpu_custom_call.1} parent=11 // pred_fallthru
          _
        // Predicated region
        $region17: #{tpu_custom_call.1} parent=11 // pred_check
          %p350 = pneg %p117
        $region18: #{tpu_custom_call.1} parent=11 // pred_check_branch
          %352 = sbr.rel (%p350) target = $region20
        $region19: #{tpu_custom_call.1} parent=11 // pred_region
          _
        $region20: #{tpu_custom_call.1} parent=11 // pred_fallthru
          _
        // Predicated region
        $region21: #{tpu_custom_call.1} parent=11 // pred_check
          %p353 = pneg %p138
        $region22: #{tpu_custom_call.1} parent=11 // pred_check_branch
          %355 = sbr.rel (%p353) target = $region24
        $region23: #{tpu_custom_call.1} parent=11 // pred_region
          _
        $region24: #{tpu_custom_call.1} parent=11 // pred_fallthru
          _
        // Predicated region
        $region25: #{tpu_custom_call.1} parent=11 // pred_check
          %p356 = pneg %p159
        $region26: #{tpu_custom_call.1} parent=11 // pred_check_branch
          %358 = sbr.rel (%p356) target = $region28
        $region27: #{tpu_custom_call.1} parent=11 // pred_region
          _
        $region28: #{tpu_custom_call.1} parent=11 // pred_fallthru
          _
        // Predicated region
        $region29: #{tpu_custom_call.1} parent=11 // pred_check
          %p359 = pneg %p180
        $region30: #{tpu_custom_call.1} parent=11 // pred_check_branch
          %361 = sbr.rel (%p359) target = $region32
        $region31: #{tpu_custom_call.1} parent=11 // pred_region
          _
        $region32: #{tpu_custom_call.1} parent=11 // pred_fallthru
          _
        // Predicated region
        $region33: #{tpu_custom_call.1} parent=11 // pred_check
          %p362 = pneg %p201
        $region34: #{tpu_custom_call.1} parent=11 // pred_check_branch
          %364 = sbr.rel (%p362) target = $region36
        $region35: #{tpu_custom_call.1} parent=11 // pred_region
          _
        $region36: #{tpu_custom_call.1} parent=11 // pred_fallthru
          _
        // Predicated region
        $region37: #{tpu_custom_call.1} parent=11 // pred_check
          %p365 = pneg %p222
        $region38: #{tpu_custom_call.1} parent=11 // pred_check_branch
          %367 = sbr.rel (%p365) target = $region40
        $region39: #{tpu_custom_call.1} parent=11 // pred_region
          _
        $region40: #{tpu_custom_call.1} parent=11 // pred_fallthru
          _
        // Predicated region
        $region41: #{tpu_custom_call.1} parent=11 // pred_check
          %p368 = pneg %p243
        $region42: #{tpu_custom_call.1} parent=11 // pred_check_branch
          %370 = sbr.rel (%p368) target = $region44
        $region43: #{tpu_custom_call.1} parent=11 // pred_region
          _
        $region44: #{tpu_custom_call.1} parent=11 // pred_fallthru
          _
        // Predicated region
        $region45: #{tpu_custom_call.1} parent=11 // pred_check
          %p371 = pneg %p264
        $region46: #{tpu_custom_call.1} parent=11 // pred_check_branch
          %373 = sbr.rel (%p371) target = $region48
        $region47: #{tpu_custom_call.1} parent=11 // pred_region
          _
        $region48: #{tpu_custom_call.1} parent=11 // pred_fallthru
          _
        // Predicated region
        $region49: #{tpu_custom_call.1} parent=11 // pred_check
          %p374 = pneg %p285
        $region50: #{tpu_custom_call.1} parent=11 // pred_check_branch
          %376 = sbr.rel (%p374) target = $region52
        $region51: #{tpu_custom_call.1} parent=11 // pred_region
          _
        $region52: #{tpu_custom_call.1} parent=11 // pred_fallthru
          _
        // Predicated region
        $region53: #{tpu_custom_call.1} parent=11 // pred_check
          %p377 = pneg %p306
        $region54: #{tpu_custom_call.1} parent=11 // pred_check_branch
          %379 = sbr.rel (%p377) target = $region56
        $region55: #{tpu_custom_call.1} parent=11 // pred_region
          _
        $region56: #{tpu_custom_call.1} parent=11 // pred_fallthru
          _
      $region12: #{tpu_custom_call.1} parent=5 // pred_fallthru
        _
      %p380 = scmp.lt.s32.totalorder %s23, 2
      // Predicated region
      $region57: #{tpu_custom_call.1} parent=5 // pred_check
        %p381 = pneg %p380
      $region58: #{tpu_custom_call.1} parent=5 // pred_check_branch
        %383 = sbr.rel (%p381) target = $region60
      $region59: #{tpu_custom_call.1} parent=5 // pred_region
        // Predicated region
        $region61: #{tpu_custom_call.1} parent=59 // pred_check
          %p384 = pneg %p43
        $region62: #{tpu_custom_call.1} parent=59 // pred_check_branch
          %386 = sbr.rel (%p384) target = $region64
        $region63: #{tpu_custom_call.1} parent=59 // pred_region
          %s387 = smul.u32 16, %s23
          %p388 = scmp.lt.s32.totalorder %s387, 31
          %s389 = scalar_select %p388, %s387, 31
          %s390 = smul.addr %s389, 8
          %s391 = scalar_lea.vmem %s0, %s390
          %s392 = smul.u32 16, %s23
        $region64: #{tpu_custom_call.1} parent=59 // pred_fallthru
          _
        // Predicated region
        $region65: #{tpu_custom_call.1} parent=59 // pred_check
          %p393 = pneg %p69
        $region66: #{tpu_custom_call.1} parent=59 // pred_check_branch
          %395 = sbr.rel (%p393) target = $region68
        $region67: #{tpu_custom_call.1} parent=59 // pred_region
          %s396 = smul.u32 16, %s23
          %p397 = scmp.lt.s32.totalorder %s396, 31
          %s398 = scalar_select %p397, %s396, 31
          %s399 = smul.addr %s398, 8
          %s400 = scalar_lea.vmem %s1, %s399
          %s401 = smul.u32 16, %s23
        $region68: #{tpu_custom_call.1} parent=59 // pred_fallthru
          _
      $region60: #{tpu_custom_call.1} parent=5 // pred_fallthru
        _
      %p402 = scmp.le.s32.totalorder 1, %s23
      %p403 = scmp.lt.s32.totalorder %s23, 3
      %p404 = pnand %p402, %p403
      %p405 = pneg %p404
      // Predicated region
      $region69: #{tpu_custom_call.1} parent=5 // pred_check
        _
      $region70: #{tpu_custom_call.1} parent=5 // pred_check_branch
        %407 = sbr.rel (%p404) target = $region72
      $region71: #{tpu_custom_call.1} parent=5 // pred_region
        %s408 = ssub.s32 %s23, 1
        %s409 = smul.u32 16, %s28
        %p410 = scmp.lt.s32.totalorder %s409, 31
        %s411 = scalar_select %p410, %s409, 31
        %s412 = smul.addr %s411, 8
        %s413 = scalar_lea.vmem %s0, %s412
        %p414 = pneg %p49
        %p415 = pneg %p46
        %s416 = smul.u32 16, %s28
        %p417 = scmp.lt.s32.totalorder %s416, 31
        %s418 = scalar_select %p417, %s416, 31
        %s419 = smul.addr %s418, 8
        %s420 = scalar_lea.vmem %s1, %s419
        %p421 = pneg %p75
        %p422 = pneg %p72
        %p423 = pneg %p96
        %p424 = pneg %p93
        %p425 = pneg %p117
        %p426 = pneg %p114
        %p427 = pneg %p138
        %p428 = pneg %p135
        %p429 = pneg %p159
        %p430 = pneg %p156
        %p431 = pneg %p180
        %p432 = pneg %p177
        %p433 = pneg %p201
        %p434 = pneg %p198
        %p435 = pneg %p222
        %p436 = pneg %p219
        %p437 = pneg %p243
        %p438 = pneg %p240
        %p439 = pneg %p264
        %p440 = pneg %p261
        %p441 = pneg %p285
        %p442 = pneg %p282
        %p443 = pneg %p306
        %p444 = pneg %p303
        %p445 = pneg %p332
        %p446 = pneg %p329
        %s447 = sand.u32 %s319, 1
        %s448 = scalar_lea.sflag [#allocation4], %s447
        %s449 = sand.u32 %s319, 1
        %s450 = scalar_lea.vmem [#allocation3], %s449
        %s451 = smul.u32 16, %s28
        %p452 = scmp.lt.s32.totalorder %s451, 31
        %s453 = scalar_select %p452, %s451, 31
        %s454 = smul.addr %s453, 8
        %s455 = scalar_lea.vmem %s0, %s454
        %s456 = smul.u32 16, %s28
        %s457 = smul.u32 16, %s28
        %p458 = scmp.lt.s32.totalorder %s457, 31
        %s459 = scalar_select %p458, %s457, 31
        %s460 = smul.addr %s459, 8
        %s461 = scalar_lea.vmem %s1, %s460
        %s462 = smul.u32 16, %s28
        %v463 = vld [vmem:[%s2] sm:$0xff]
        %v464 = vld [vmem:[%s2 + $0x8] sm:$0xff]
        %v465 = vld [vmem:[%s2 + $0x10] sm:$0xff]
        %v466 = vld [vmem:[%s2 + $0x18] sm:$0xff]
        %v467 = vld [vmem:[%s455] sm:$0xff]
        %v468 = vld [vmem:[%s455 + $0x8] sm:$0xff]
        %v469 = vld [vmem:[%s455 + $0x10] sm:$0xff]
        %v470 = vld [vmem:[%s455 + $0x18] sm:$0xff]
        %v471 = vld [vmem:[%s455 + $0x20] sm:$0xff]
        %v472 = vld [vmem:[%s455 + $0x28] sm:$0xff]
        %v473 = vld [vmem:[%s455 + $0x30] sm:$0xff]
        %v474 = vld [vmem:[%s455 + $0x38] sm:$0xff]
        %v475 = vld [vmem:[%s455 + $0x40] sm:$0xff]
        %v476 = vld [vmem:[%s455 + $0x48] sm:$0xff]
        %v477 = vld [vmem:[%s455 + $0x50] sm:$0xff]
        %v478 = vld [vmem:[%s455 + $0x58] sm:$0xff]
        %v479 = vld [vmem:[%s455 + $0x60] sm:$0xff]
        %v480 = vld [vmem:[%s455 + $0x68] sm:$0xff]
        %v481 = vld [vmem:[%s455 + $0x70] sm:$0xff]
        %v482 = vld [vmem:[%s455 + $0x78] sm:$0xff]
        %v483 = vld [vmem:[%s3] sm:$0xff]
        %v484 = vld [vmem:[%s3 + $0x8] sm:$0xff]
        %v485 = vld [vmem:[%s3 + $0x10] sm:$0xff]
        %v486 = vld [vmem:[%s3 + $0x18] sm:$0xff]
        %488 = vset.pattern.permute.xlu0 0
        %489 = vperm.xlu0 %488, %v483
        %v490 = vpop.permute.xlu0 %489
        %493 = vset.pattern.permute.xlu0 0
        %494 = vperm.xlu0 %493, %v484
        %v495 = vpop.permute.xlu0 %494
        %498 = vset.pattern.permute.xlu0 0
        %499 = vperm.xlu0 %498, %v485
        %v500 = vpop.permute.xlu0 %499
        %503 = vset.pattern.permute.xlu0 0
        %504 = vperm.xlu0 %503, %v486
        %v505 = vpop.permute.xlu0 %504
        %vm507 = vcmask 130048
        %v509 = vsel %vm507, %v463, 0
        %v512 = vsel %vm507, %v464, 0
        %v515 = vsel %vm507, %v465, 0
        %v518 = vsel %vm507, %v466, 0
        %v521 = vsel %vm507, %v467, 0
        %v524 = vsel %vm507, %v468, 0
        %v527 = vsel %vm507, %v469, 0
        %v530 = vsel %vm507, %v470, 0
        %v533 = vsel %vm507, %v471, 0
        %v536 = vsel %vm507, %v472, 0
        %v539 = vsel %vm507, %v473, 0
        %v542 = vsel %vm507, %v474, 0
        %v545 = vsel %vm507, %v475, 0
        %v548 = vsel %vm507, %v476, 0
        %v551 = vsel %vm507, %v477, 0
        %v554 = vsel %vm507, %v478, 0
        %v557 = vsel %vm507, %v479, 0
        %v560 = vsel %vm507, %v480, 0
        %v563 = vsel %vm507, %v481, 0
        %v566 = vsel %vm507, %v482, 0
        %568 = vmatpush.xpose.msra.mxu0 %v566
        %569 = vmatpush.xpose.msra.mxu0 %v563
        %570 = vmatpush.xpose.msra.mxu0 %v560
        %571 = vmatpush.xpose.msra.mxu0 %v557
        %572 = vmatpush.xpose.msra.mxu0 %v554
        %573 = vmatpush.xpose.msra.mxu0 %v551
        %574 = vmatpush.xpose.msra.mxu0 %v548
        %575 = vmatpush.xpose.msra.mxu0 %v545
        %576 = vmatpush.xpose.msra.mxu0 %v542
        %577 = vmatpush.xpose.msra.mxu0 %v539
        %578 = vmatpush.xpose.msra.mxu0 %v536
        %579 = vmatpush.xpose.msra.mxu0 %v533
        %580 = vmatpush.xpose.msra.mxu0 %v530
        %581 = vmatpush.xpose.msra.mxu0 %v527
        %582 = vmatpush.xpose.msra.mxu0 %v524
        %583 = vmatpush.xpose.msra.mxu0 %v521
        %584 = vmatmul.f32.gmra.mxu0 %v509
        %v585 = vpop.f32.mrf.mxu0
        %v586 = vadd.f32 %v490, %v585
        %587 = vmatmul.f32.gmra.mxu0 %v512
        %v588 = vpop.f32.mrf.mxu0
        %v589 = vadd.f32 %v495, %v588
        %590 = vmatmul.f32.gmra.mxu0 %v515
        %v591 = vpop.f32.mrf.mxu0
        %v592 = vadd.f32 %v500, %v591
        %593 = vmatmul.f32.gmra.mxu0 %v518
        %v594 = vpop.f32.mrf.mxu0
        %v595 = vadd.f32 %v505, %v594
        %596 = vdwg.mxu0
        %v597 = vmax.f32 %v586, 0.0
        %v598 = vmax.f32 %v589, 0.0
        %v599 = vmax.f32 %v592, 0.0
        %v600 = vmax.f32 %v595, 0.0
        %v601 = vld [vmem:[%s4] sm:$0xff]
        %v602 = vld [vmem:[%s4 + $0x8] sm:$0xff]
        %v603 = vld [vmem:[%s4 + $0x10] sm:$0xff]
        %v604 = vld [vmem:[%s4 + $0x18] sm:$0xff]
        %v605 = vld [vmem:[%s4 + $0x20] sm:$0xff]
        %v606 = vld [vmem:[%s4 + $0x28] sm:$0xff]
        %v607 = vld [vmem:[%s4 + $0x30] sm:$0xff]
        %v608 = vld [vmem:[%s4 + $0x38] sm:$0xff]
        %v609 = vld [vmem:[%s5] sm:$0xff]
        %v610 = vld [vmem:[%s5 + $0x8] sm:$0xff]
        %v611 = vld [vmem:[%s5 + $0x10] sm:$0xff]
        %v612 = vld [vmem:[%s5 + $0x18] sm:$0xff]
        %v613 = vld [vmem:[%s5 + $0x20] sm:$0xff]
        %v614 = vld [vmem:[%s5 + $0x28] sm:$0xff]
        %v615 = vld [vmem:[%s5 + $0x30] sm:$0xff]
        %v616 = vld [vmem:[%s5 + $0x38] sm:$0xff]
        %v617 = vld [vmem:[%s461] sm:$0xff]
        %v618 = vld [vmem:[%s461 + $0x8] sm:$0xff]
        %v619 = vld [vmem:[%s461 + $0x10] sm:$0xff]
        %v620 = vld [vmem:[%s461 + $0x18] sm:$0xff]
        %v621 = vld [vmem:[%s461 + $0x20] sm:$0xff]
        %v622 = vld [vmem:[%s461 + $0x28] sm:$0xff]
        %v623 = vld [vmem:[%s461 + $0x30] sm:$0xff]
        %v624 = vld [vmem:[%s461 + $0x38] sm:$0xff]
        %v625 = vld [vmem:[%s461 + $0x40] sm:$0xff]
        %v626 = vld [vmem:[%s461 + $0x48] sm:$0xff]
        %v627 = vld [vmem:[%s461 + $0x50] sm:$0xff]
        %v628 = vld [vmem:[%s461 + $0x58] sm:$0xff]
        %v629 = vld [vmem:[%s461 + $0x60] sm:$0xff]
        %v630 = vld [vmem:[%s461 + $0x68] sm:$0xff]
        %v631 = vld [vmem:[%s461 + $0x70] sm:$0xff]
        %v632 = vld [vmem:[%s461 + $0x78] sm:$0xff]
        %vm633 = vcmask 31744
        %v635 = vsel %vm633, %v609, 0
        %v638 = vsel %vm633, %v610, 0
        %v641 = vsel %vm633, %v611, 0
        %v644 = vsel %vm633, %v612, 0
        %v647 = vsel %vm633, %v613, 0
        %v650 = vsel %vm633, %v614, 0
        %v653 = vsel %vm633, %v615, 0
        %v656 = vsel %vm633, %v616, 0
        %v659 = vsel %vm633, %v617, 0
        %v662 = vsel %vm633, %v618, 0
        %v665 = vsel %vm633, %v619, 0
        %v668 = vsel %vm633, %v620, 0
        %v671 = vsel %vm633, %v621, 0
        %v674 = vsel %vm633, %v622, 0
        %v677 = vsel %vm633, %v623, 0
        %v680 = vsel %vm633, %v624, 0
        %v683 = vsel %vm633, %v625, 0
        %v686 = vsel %vm633, %v626, 0
        %v689 = vsel %vm633, %v627, 0
        %v692 = vsel %vm633, %v628, 0
        %v695 = vsel %vm633, %v629, 0
        %v698 = vsel %vm633, %v630, 0
        %v701 = vsel %vm633, %v631, 0
        %v704 = vsel %vm633, %v632, 0
        %706 = vmatpush.xpose.msra.mxu0 %v704
        %707 = vmatpush.xpose.msra.mxu0 %v701
        %708 = vmatpush.xpose.msra.mxu0 %v698
        %709 = vmatpush.xpose.msra.mxu0 %v695
        %710 = vmatpush.xpose.msra.mxu0 %v692
        %711 = vmatpush.xpose.msra.mxu0 %v689
        %712 = vmatpush.xpose.msra.mxu0 %v686
        %713 = vmatpush.xpose.msra.mxu0 %v683
        %714 = vmatpush.xpose.msra.mxu0 %v680
        %715 = vmatpush.xpose.msra.mxu0 %v677
        %716 = vmatpush.xpose.msra.mxu0 %v674
        %717 = vmatpush.xpose.msra.mxu0 %v671
        %718 = vmatpush.xpose.msra.mxu0 %v668
        %719 = vmatpush.xpose.msra.mxu0 %v665
        %720 = vmatpush.xpose.msra.mxu0 %v662
        %721 = vmatpush.xpose.msra.mxu0 %v659
        %722 = vmatmul.f32.gmra.mxu0 %v635
        %v723 = vpop.f32.mrf.mxu0
        %v724 = vadd.f32 0.0, %v723
        %725 = vmatmul.f32.gmra.mxu0 %v638
        %v726 = vpop.f32.mrf.mxu0
        %v727 = vadd.f32 0.0, %v726
        %728 = vmatmul.f32.gmra.mxu0 %v641
        %v729 = vpop.f32.mrf.mxu0
        %v730 = vadd.f32 0.0, %v729
        %731 = vmatmul.f32.gmra.mxu0 %v644
        %v732 = vpop.f32.mrf.mxu0
        %v733 = vadd.f32 0.0, %v732
        %734 = vmatmul.f32.gmra.mxu0 %v647
        %v735 = vpop.f32.mrf.mxu0
        %v736 = vadd.f32 0.0, %v735
        %737 = vmatmul.f32.gmra.mxu0 %v650
        %v738 = vpop.f32.mrf.mxu0
        %v739 = vadd.f32 0.0, %v738
        %740 = vmatmul.f32.gmra.mxu0 %v653
        %v741 = vpop.f32.mrf.mxu0
        %v742 = vadd.f32 0.0, %v741
        %743 = vmatmul.f32.gmra.mxu0 %v656
        %v744 = vpop.f32.mrf.mxu0
        %v745 = vadd.f32 0.0, %v744
        %746 = vdwg.mxu0
        %vm747 = vcmask 261120
        %v749 = vsel %vm747, %v601, 0
        %v752 = vsel %vm747, %v602, 0
        %v755 = vsel %vm747, %v603, 0
        %v758 = vsel %vm747, %v604, 0
        %v761 = vsel %vm747, %v605, 0
        %v764 = vsel %vm747, %v606, 0
        %v767 = vsel %vm747, %v607, 0
        %v770 = vsel %vm747, %v608, 0
        %772 = vmatpush.msra.mxu0 0.0
        %773 = vmatpush.msra.mxu0 0.0
        %774 = vmatpush.msra.mxu0 0.0
        %775 = vmatpush.msra.mxu0 0.0
        %776 = vmatpush.msra.mxu0 0.0
        %777 = vmatpush.msra.mxu0 0.0
        %778 = vmatpush.msra.mxu0 0.0
        %779 = vmatpush.msra.mxu0 0.0
        %780 = vmatpush.msra.mxu0 0.0
        %781 = vmatpush.msra.mxu0 0.0
        %782 = vmatpush.msra.mxu0 0.0
        %783 = vmatpush.msra.mxu0 0.0
        %784 = vmatpush.msra.mxu0 %v600
        %785 = vmatpush.msra.mxu0 %v599
        %786 = vmatpush.msra.mxu0 %v598
        %787 = vmatpush.msra.mxu0 %v597
        %788 = vmatmul.f32.gmra.mxu0 %v749
        %v789 = vpop.f32.mrf.mxu0
        %v790 = vadd.f32 %v724, %v789
        %791 = vmatmul.f32.gmra.mxu0 %v752
        %v792 = vpop.f32.mrf.mxu0
        %v793 = vadd.f32 %v727, %v792
        %794 = vmatmul.f32.gmra.mxu0 %v755
        %v795 = vpop.f32.mrf.mxu0
        %v796 = vadd.f32 %v730, %v795
        %797 = vmatmul.f32.gmra.mxu0 %v758
        %v798 = vpop.f32.mrf.mxu0
        %v799 = vadd.f32 %v733, %v798
        %800 = vmatmul.f32.gmra.mxu0 %v761
        %v801 = vpop.f32.mrf.mxu0
        %v802 = vadd.f32 %v736, %v801
        %803 = vmatmul.f32.gmra.mxu0 %v764
        %v804 = vpop.f32.mrf.mxu0
        %v805 = vadd.f32 %v739, %v804
        %806 = vmatmul.f32.gmra.mxu0 %v767
        %v807 = vpop.f32.mrf.mxu0
        %v808 = vadd.f32 %v742, %v807
        %809 = vmatmul.f32.gmra.mxu0 %v770
        %v810 = vpop.f32.mrf.mxu0
        %v811 = vadd.f32 %v745, %v810
        %812 = vdwg.mxu0
        %v813 = vld [vmem:[%s6] sm:$0xff]
        %v814 = vld [vmem:[%s6 + $0x8] sm:$0xff]
        %v815 = vld [vmem:[%s6 + $0x10] sm:$0xff]
        %v816 = vld [vmem:[%s6 + $0x18] sm:$0xff]
        %v817 = vld [vmem:[%s6 + $0x20] sm:$0xff]
        %v818 = vld [vmem:[%s6 + $0x28] sm:$0xff]
        %v819 = vld [vmem:[%s6 + $0x30] sm:$0xff]
        %v820 = vld [vmem:[%s6 + $0x38] sm:$0xff]
        %822 = vset.pattern.permute.xlu0 0
        %823 = vperm.xlu0 %822, %v813
        %v824 = vpop.permute.xlu0 %823
        %827 = vset.pattern.permute.xlu0 0
        %828 = vperm.xlu0 %827, %v814
        %v829 = vpop.permute.xlu0 %828
        %832 = vset.pattern.permute.xlu0 0
        %833 = vperm.xlu0 %832, %v815
        %v834 = vpop.permute.xlu0 %833
        %837 = vset.pattern.permute.xlu0 0
        %838 = vperm.xlu0 %837, %v816
        %v839 = vpop.permute.xlu0 %838
        %842 = vset.pattern.permute.xlu0 0
        %843 = vperm.xlu0 %842, %v817
        %v844 = vpop.permute.xlu0 %843
        %847 = vset.pattern.permute.xlu0 0
        %848 = vperm.xlu0 %847, %v818
        %v849 = vpop.permute.xlu0 %848
        %852 = vset.pattern.permute.xlu0 0
        %853 = vperm.xlu0 %852, %v819
        %v854 = vpop.permute.xlu0 %853
        %857 = vset.pattern.permute.xlu0 0
        %858 = vperm.xlu0 %857, %v820
        %v859 = vpop.permute.xlu0 %858
        %v861 = vadd.f32 %v790, %v824
        %v862 = vadd.f32 %v793, %v829
        %v863 = vadd.f32 %v796, %v834
        %v864 = vadd.f32 %v799, %v839
        %v865 = vadd.f32 %v802, %v844
        %v866 = vadd.f32 %v805, %v849
        %v867 = vadd.f32 %v808, %v854
        %v868 = vadd.f32 %v811, %v859
        %v869 = vmax.f32 %v861, 0.0
        %v870 = vmax.f32 %v862, 0.0
        %v871 = vmax.f32 %v863, 0.0
        %v872 = vmax.f32 %v864, 0.0
        %v873 = vmax.f32 %v865, 0.0
        %v874 = vmax.f32 %v866, 0.0
        %v875 = vmax.f32 %v867, 0.0
        %v876 = vmax.f32 %v868, 0.0
        %v877 = vld [vmem:[%s7] sm:$0xff]
        %v878 = vld [vmem:[%s7 + $0x8] sm:$0xff]
        %v879 = vld [vmem:[%s7 + $0x10] sm:$0xff]
        %v880 = vld [vmem:[%s7 + $0x18] sm:$0xff]
        %v881 = vld [vmem:[%s8] sm:$0xff]
        %v882 = vld [vmem:[%s8 + $0x8] sm:$0xff]
        %v883 = vld [vmem:[%s8 + $0x10] sm:$0xff]
        %v884 = vld [vmem:[%s8 + $0x18] sm:$0xff]
        %886 = vset.pattern.permute.xlu0 0
        %887 = vperm.xlu0 %886, %v881
        %v888 = vpop.permute.xlu0 %887
        %891 = vset.pattern.permute.xlu0 0
        %892 = vperm.xlu0 %891, %v882
        %v893 = vpop.permute.xlu0 %892
        %896 = vset.pattern.permute.xlu0 0
        %897 = vperm.xlu0 %896, %v883
        %v898 = vpop.permute.xlu0 %897
        %901 = vset.pattern.permute.xlu0 0
        %902 = vperm.xlu0 %901, %v884
        %v903 = vpop.permute.xlu0 %902
        %vm905 = vcmask 523264
        %v907 = vsel %vm905, %v877, 0
        %v910 = vsel %vm905, %v878, 0
        %v913 = vsel %vm905, %v879, 0
        %v916 = vsel %vm905, %v880, 0
        %918 = vmatpush.msra.mxu0 0.0
        %919 = vmatpush.msra.mxu0 0.0
        %920 = vmatpush.msra.mxu0 0.0
        %921 = vmatpush.msra.mxu0 0.0
        %922 = vmatpush.msra.mxu0 0.0
        %923 = vmatpush.msra.mxu0 0.0
        %924 = vmatpush.msra.mxu0 0.0
        %925 = vmatpush.msra.mxu0 0.0
        %926 = vmatpush.msra.mxu0 %v876
        %927 = vmatpush.msra.mxu0 %v875
        %928 = vmatpush.msra.mxu0 %v874
        %929 = vmatpush.msra.mxu0 %v873
        %930 = vmatpush.msra.mxu0 %v872
        %931 = vmatpush.msra.mxu0 %v871
        %932 = vmatpush.msra.mxu0 %v870
        %933 = vmatpush.msra.mxu0 %v869
        %934 = vmatmul.f32.gmra.mxu0 %v907
        %v935 = vpop.f32.mrf.mxu0
        %v936 = vadd.f32 %v888, %v935
        %937 = vmatmul.f32.gmra.mxu0 %v910
        %v938 = vpop.f32.mrf.mxu0
        %v939 = vadd.f32 %v893, %v938
        %940 = vmatmul.f32.gmra.mxu0 %v913
        %v941 = vpop.f32.mrf.mxu0
        %v942 = vadd.f32 %v898, %v941
        %943 = vmatmul.f32.gmra.mxu0 %v916
        %v944 = vpop.f32.mrf.mxu0
        %v945 = vadd.f32 %v903, %v944
        %946 = vdwg.mxu0
        %v947 = vmax.f32 %v936, 0.0
        %v948 = vmax.f32 %v939, 0.0
        %v949 = vmax.f32 %v942, 0.0
        %v950 = vmax.f32 %v945, 0.0
        %v951 = vld [vmem:[%s9] sm:$0xff]
        %v952 = vld [vmem:[%s9 + $0x8] sm:$0xff]
        %v953 = vld [vmem:[%s9 + $0x10] sm:$0xff]
        %v954 = vld [vmem:[%s9 + $0x18] sm:$0xff]
        %v955 = vld [vmem:[%s10] sm:$0xff]
        %v956 = vld [vmem:[%s10 + $0x8] sm:$0xff]
        %v957 = vld [vmem:[%s10 + $0x10] sm:$0xff]
        %v958 = vld [vmem:[%s10 + $0x18] sm:$0xff]
        %960 = vset.pattern.permute.xlu0 0
        %961 = vperm.xlu0 %960, %v955
        %v962 = vpop.permute.xlu0 %961
        %965 = vset.pattern.permute.xlu0 0
        %966 = vperm.xlu0 %965, %v956
        %v967 = vpop.permute.xlu0 %966
        %970 = vset.pattern.permute.xlu0 0
        %971 = vperm.xlu0 %970, %v957
        %v972 = vpop.permute.xlu0 %971
        %975 = vset.pattern.permute.xlu0 0
        %976 = vperm.xlu0 %975, %v958
        %v977 = vpop.permute.xlu0 %976
        %v980 = vsel %vm747, %v951, 0
        %v983 = vsel %vm747, %v952, 0
        %v986 = vsel %vm747, %v953, 0
        %v989 = vsel %vm747, %v954, 0
        %991 = vmatpush.msra.mxu0 0.0
        %992 = vmatpush.msra.mxu0 0.0
        %993 = vmatpush.msra.mxu0 0.0
        %994 = vmatpush.msra.mxu0 0.0
        %995 = vmatpush.msra.mxu0 0.0
        %996 = vmatpush.msra.mxu0 0.0
        %997 = vmatpush.msra.mxu0 0.0
        %998 = vmatpush.msra.mxu0 0.0
        %999 = vmatpush.msra.mxu0 0.0
        %1000 = vmatpush.msra.mxu0 0.0
        %1001 = vmatpush.msra.mxu0 0.0
        %1002 = vmatpush.msra.mxu0 0.0
        %1003 = vmatpush.msra.mxu0 %v950
        %1004 = vmatpush.msra.mxu0 %v949
        %1005 = vmatpush.msra.mxu0 %v948
        %1006 = vmatpush.msra.mxu0 %v947
        %1007 = vmatmul.f32.gmra.mxu0 %v980
        %v1008 = vpop.f32.mrf.mxu0
        %v1009 = vadd.f32 %v962, %v1008
        %1010 = vmatmul.f32.gmra.mxu0 %v983
        %v1011 = vpop.f32.mrf.mxu0
        %v1012 = vadd.f32 %v967, %v1011
        %1013 = vmatmul.f32.gmra.mxu0 %v986
        %v1014 = vpop.f32.mrf.mxu0
        %v1015 = vadd.f32 %v972, %v1014
        %1016 = vmatmul.f32.gmra.mxu0 %v989
        %v1017 = vpop.f32.mrf.mxu0
        %v1018 = vadd.f32 %v977, %v1017
        %1019 = vdwg.mxu0
        %v1020 = vmax.f32 %v1009, 0.0
        %v1021 = vmax.f32 %v1012, 0.0
        %v1022 = vmax.f32 %v1015, 0.0
        %v1023 = vmax.f32 %v1018, 0.0
        %v1024 = vld [vmem:[%s11] sm:$0xff]
        %v1025 = vld [vmem:[%s11 + $0x8] sm:$0xff]
        %v1026 = vld [vmem:[%s11 + $0x10] sm:$0xff]
        %v1027 = vld [vmem:[%s11 + $0x18] sm:$0xff]
        %1029 = vset.pattern.permute.xlu0 0
        %1030 = vperm.xlu0 %1029, %v1024
        %v1031 = vpop.permute.xlu0 %1030
        %1034 = vset.pattern.permute.xlu0 0
        %1035 = vperm.xlu0 %1034, %v1025
        %v1036 = vpop.permute.xlu0 %1035
        %1039 = vset.pattern.permute.xlu0 0
        %1040 = vperm.xlu0 %1039, %v1026
        %v1041 = vpop.permute.xlu0 %1040
        %1044 = vset.pattern.permute.xlu0 0
        %1045 = vperm.xlu0 %1044, %v1027
        %v1046 = vpop.permute.xlu0 %1045
        %v1048 = vmul.f32 %v1020, %v1031
        %v1049 = vmul.f32 %v1021, %v1036
        %v1050 = vmul.f32 %v1022, %v1041
        %v1051 = vmul.f32 %v1023, %v1046
        %v1052 = vadd.f32 %v1048, %v1049
        %v1053 = vadd.f32 %v1052, %v1050
        %v1054 = vadd.f32 %v1053, %v1051
        %v1055 = vrot.slane %v1054, 4
        %v1056 = vadd.f32 %v1054, %v1055
        %v1057 = vrot.slane %v1056, 2
        %v1058 = vadd.f32 %v1056, %v1057
        %v1059 = vrot.slane %v1058, 1
        %v1060 = vadd.f32 %v1058, %v1059
        %s1061 = sld [smem:[#allocation2]]
        %v1062 = vstv %s1061
        %v1063 = vadd.f32 %v1060, %v1062
        %1064 = vst [vmem:[%s450] sm:$0x1] %v1063
        %s1065 = sand.u32 %s319, 1
        %s1066 = scalar_lea.sflag [#allocation4], %s1065
        %s1067 = sand.u32 %s319, 1
        %s1068 = scalar_lea.vmem [#allocation3], %s1067
        // Predicated region
        $region73: #{tpu_custom_call.1} parent=71 // pred_check
          %p1069 = pneg %p329
        $region74: #{tpu_custom_call.1} parent=71 // pred_check_branch
          %1071 = sbr.rel (%p1069) target = $region76
        $region75: #{tpu_custom_call.1} parent=71 // pred_region
          %1073 = vsyncadd %s1066, 0
          %s1074 = scalar_lea.hbm %s13, %s28
          %s1076 = sshll.u32 %s1068, 4
          %s1077 = int_to_ptr.vmem [resolvable:$true] %s1076
          %s1078 = sshll.u32 %s1074, 4
          %s1079 = int_to_ptr.hbm [resolvable:$true] %s1078
          %1081 = dma.vmem_to_hbm [thread:$0]  %s1077, 16, %s1079, %s1066
        $region76: #{tpu_custom_call.1} parent=71 // pred_fallthru
          _
      $region72: #{tpu_custom_call.1} parent=5 // pred_fallthru
        _
      %p1082 = scmp.le.s32.totalorder 2, %s23
      // Predicated region
      $region77: #{tpu_custom_call.1} parent=5 // pred_check
        %p1083 = pneg %p1082
      $region78: #{tpu_custom_call.1} parent=5 // pred_check_branch
        %1085 = sbr.rel (%p1083) target = $region80
      $region79: #{tpu_custom_call.1} parent=5 // pred_region
        %s1086 = ssub.s32 %s23, 2
        // Predicated region
        $region81: #{tpu_custom_call.1} parent=79 // pred_check
          %p1087 = pneg %p335
        $region82: #{tpu_custom_call.1} parent=79 // pred_check_branch
          %1089 = sbr.rel (%p1087) target = $region84
        $region83: #{tpu_custom_call.1} parent=79 // pred_region
          %s1090 = sand.u32 %s320, 1
          %s1091 = scalar_lea.sflag [#allocation4], %s1090
          %s1092 = sand.u32 %s320, 1
          %s1093 = scalar_lea.vmem [#allocation3], %s1092
          %1095 = dma.done %s1091, 16
        $region84: #{tpu_custom_call.1} parent=79 // pred_fallthru
          _
      $region80: #{tpu_custom_call.1} parent=5 // pred_fallthru
        _
    $region6: #{tpu_custom_call.1} parent=1 // loop_footer
      %s27 = sadd.s32 1, %s23
    $region7: #{tpu_custom_call.1} parent=1 // loop_footer_branch
      %22 = sbr.rel target = $region3
    $region8: #{tpu_custom_call.1} parent=1 // loop_exit
      _
    %1096 = vsyncpa [#allocation4], 1
    %s1097 = scalar_lea.sflag [#allocation4], 1
    %1098 = vsyncpa %s1097, 1

</llo_original>
